<compile_context>
chip_gen: v5e
topology: v5e:2x2
jax: 0.10.0
libtpu: 0.0.40
codegen_flags: <defaults>
</compile_context>

<pallas_src>
import jax
import jax.numpy as jnp
from jax import lax
from jax.experimental import pallas as pl
from jax.experimental.pallas import tpu as pltpu

LANE = 128
_TARGET_BLOCK_BYTES = 4 * 1024 * 1024   # per-input HBM bytes moved per grid step


def _device_kind() -> str:
    try:
        return jax.devices()[0].device_kind.lower()
    except Exception:
        return ""


def _num_tensorcores() -> int:
    # v7x exposes 2 TensorCores per chip; v5e/v6e have 1.  Default to 1.
    return 2 if "v7" in _device_kind() else 1


def _vmem_limit() -> int:
    # v7x: 64 MiB physical VMEM -> stay well under; v5e/v6e: 128 MiB physical.
    return (56 if "v7" in _device_kind() else 64) * 1024 * 1024


def _sublane_multiple(dtype) -> int:
    """Second-minor block dim must be a multiple of this (or the full dim)."""
    return {4: 8, 2: 16, 1: 32}.get(jnp.dtype(dtype).itemsize, 8)


def _make_kernel(K_total, KC, CR, R, need_chunk_guard, need_row_mask):
    """Build the kernel with all sizes baked in statically."""

    def kernel(x_ref, t_ref, inter_ref, union_ref):
        c = pl.program_id(0)          # core / partial-output index
        k = pl.program_id(2)          # feature-chunk step within this core
        chunk = c * KC + k            # global feature-chunk index

        @pl.when(k == 0)
        def _init():
            inter_ref[...] = jnp.zeros_like(inter_ref)
            union_ref[...] = jnp.zeros_like(union_ref)

        def accumulate(mask_rows):
            x = x_ref[...].astype(jnp.float32)   # (TB, CR, LANE); f32 accumulation
            t = t_ref[...].astype(jnp.float32)
            if mask_rows:
                # Final (ragged) chunk only: rows >= R are garbage from the
                # partial boundary DMA -> zero them before the products.
                row = chunk * CR + lax.broadcasted_iota(jnp.int32, (1, CR, LANE), 1)
                valid = row < R
                x = jnp.where(valid, x, 0.0)
                t = jnp.where(valid, t, 0.0)
            # Fold the CR sublane rows; keep per-(batch, lane) partials so the
            # expensive cross-lane reduction happens once, outside the kernel.
            inter_ref[...] += jnp.sum(x * t, axis=1)[None]          # (1, TB, LANE)
            union_ref[...] += jnp.sum(x * x + t * t, axis=1)[None]  # (1, TB, LANE)

        if need_row_mask:
            # Only the true last chunk pays for the iota/compare/select path;
            # phantom chunks (chunk >= K_total) match neither branch.
            pl.when(chunk < K_total - 1)(lambda: accumulate(False))
            pl.when(chunk == K_total - 1)(lambda: accumulate(True))
        elif need_chunk_guard:
            pl.when(chunk < K_total)(lambda: accumulate(False))
        else:
            accumulate(False)

    return kernel


def dice_loss(x, target):
    """Pallas DiceLoss forward. x/target: any shape (B, ...), same shape."""
    assert x.shape == target.shape
    B = x.shape[0]

    dt = jnp.promote_types(x.dtype, target.dtype)
    if not jnp.issubdtype(dt, jnp.floating):
        dt = jnp.float32
    # Do NOT upcast low-precision activations: stream bf16/f16 at native width
    # (halves HBM traffic); the kernel accumulates in f32.
    xf = x.astype(dt).reshape(B, -1)
    tf = target.astype(dt).reshape(B, -1)
    N = xf.shape[1]

    rem = N % LANE
    if rem:
        # TODO(synk): replace this pad (extra HBM round-trip) with an in-kernel
        # lane-tail mask for flattened feature dims not divisible by 128.
        pad = LANE - rem
        xf = jnp.pad(xf, ((0, 0), (0, pad)))
        tf = jnp.pad(tf, ((0, 0), (0, pad)))
    R = xf.shape[1] // LANE
    xr = xf.reshape(B, R, LANE)   # free reshape when rem == 0 (no HBM copy)
    tr = tf.reshape(B, R, LANE)

    itemsize = jnp.dtype(dt).itemsize
    sub = _sublane_multiple(dt)
    row_bytes = LANE * itemsize             # bytes of one 128-lane feature row

    # ---- batch tiling: guard large B from blowing the VMEM block budget ----
    if B * sub * row_bytes <= _TARGET_BLOCK_BYTES:
        TB = B
    else:
        TB = max(8, (_TARGET_BLOCK_BYTES // (sub * row_bytes)) // 8 * 8)
        TB = B if TB >= B else TB           # must be a multiple of 8 or == B
    BT = -(-B // TB)

    # ---- feature-chunk rows: ~_TARGET_BLOCK_BYTES of *actual* HBM bytes ----
    cr_budget = max(sub, (_TARGET_BLOCK_BYTES // (TB * row_bytes)) // sub * sub)
    if cr_budget >= R:
        CR = R                              # single chunk; full-dim block
    else:
        CR = 0
        for cand in range(cr_budget, 0, -sub):   # prefer a divisor of R ...
            if R % cand == 0:
                CR = cand
                break
        if CR * 2 < cr_budget:              # ... unless it is too small
            CR = cr_budget
    K_total = -(-R // CR)
    need_row_mask = (R % CR != 0)

    # ---- core split: only on multi-TensorCore chips, clamped to the work ----
    NC = min(_num_tensorcores(), K_total)
    KC = -(-K_total // NC)
    need_chunk_guard = (NC * KC != K_total)

    kernel = _make_kernel(K_total, KC, CR, R, need_chunk_guard, need_row_mask)

    if need_chunk_guard:
        def in_map(c, b, k):
            # Phantom steps clamp to the core's own last valid chunk, so the
            # block index repeats and Pallas elides the redundant DMA.
            return (b, jnp.minimum(c * KC + k, K_total - 1), 0)
    else:
        def in_map(c, b, k):
            return (b, c * KC + k, 0)

    def out_map(c, b, k):
        return (c, b, 0)                    # resident per-(core, batch-tile) slab

    inter, union = pl.pallas_call(
        kernel,
        out_shape=(
            jax.ShapeDtypeStruct((NC, B, LANE), jnp.float32),
            jax.ShapeDtypeStruct((NC, B, LANE), jnp.float32),
        ),
        grid_spec=pltpu.PrefetchScalarGridSpec(
            num_scalar_prefetch=0,
            grid=(NC, BT, KC),
            in_specs=[
                pl.BlockSpec((TB, CR, LANE), in_map),
                pl.BlockSpec((TB, CR, LANE), in_map),
            ],
            out_specs=[
                pl.BlockSpec((1, TB, LANE), out_map),
                pl.BlockSpec((1, TB, LANE), out_map),
            ],
        ),
        compiler_params=pltpu.CompilerParams(
            dimension_semantics=("parallel", "parallel", "arbitrary"),
            vmem_limit_bytes=_vmem_limit(),
        ),
    )(xr, tr)

    # Tiny epilogue in plain JAX: combine per-core / per-lane partials.
    intersect = jnp.sum(inter, axis=(0, 2))     # (B,)
    union_sum = jnp.sum(union, axis=(0, 2))     # (B,)
    smooth = jnp.float32(1.0)
    loss = 1.0 - (2.0 * intersect + smooth) / (union_sum + smooth)
    return jnp.mean(loss)


def dice_loss_ref(x, target):
    """Pure-JAX reference matching the PyTorch module."""
    axes = tuple(range(1, x.ndim))
    intersect = jnp.sum(x * target, axis=axes)
    union = jnp.sum(x ** 2, axis=axes) + jnp.sum(target ** 2, axis=axes)
    loss = 1.0 - (2.0 * intersect + 1.0) / (union + 1.0)
    return jnp.mean(loss)


if __name__ == "__main__":
    key = jax.random.PRNGKey(0)
    k1, k2 = jax.random.split(key)
    # NCHW like the PyTorch segmentation usage: (batch=2, channels=4, 16, 16)
    x = jax.nn.sigmoid(jax.random.normal(k1, (2, 4, 16, 16), dtype=jnp.float32))
    t = (jax.random.uniform(k2, (2, 4, 16, 16)) > 0.5).astype(jnp.float32)

    out = jax.block_until_ready(dice_loss(x, t))
    ref = jax.block_until_ready(dice_loss_ref(x, t))
    assert jnp.allclose(out, ref, atol=1e-5, rtol=1e-5), (out, ref)
    print("KERNEL_OK")
</pallas_src>

<mosaic_0001>
module attributes {stable_mosaic.version = 11 : i64} {
  func.func @kernel(%arg0: i32, %arg1: i32, %arg2: i32, %arg3: memref<2x8x128xf32, #tpu.memory_space<vmem>>, %arg4: memref<2x8x128xf32, #tpu.memory_space<vmem>>, %arg5: memref<1x2x128xf32, #tpu.memory_space<vmem>>, %arg6: memref<1x2x128xf32, #tpu.memory_space<vmem>>) attributes {dimension_semantics = [#tpu.dimension_semantics<parallel>, #tpu.dimension_semantics<parallel>, #tpu.dimension_semantics<arbitrary>], iteration_bounds = array<i64: 1, 1, 1>, scalar_prefetch = 0 : i64, scratch_operands = 0 : i64, tpu.core_type = #tpu.core_type<tc>, window_params = [{transform_indices = @transform_0, window_bounds = array<i64: 2, 8, 128>}, {transform_indices = @transform_1, window_bounds = array<i64: 2, 8, 128>}, {transform_indices = @transform_2, window_bounds = array<i64: 1, 2, 128>}, {transform_indices = @transform_3, window_bounds = array<i64: 1, 2, 128>}]} {
    %c0_i32 = arith.constant 0 : i32
    %0 = arith.cmpi eq, %arg2, %c0_i32 : i32
    %1 = arith.extui %0 : i1 to i32
    %c0_i32_0 = arith.constant 0 : i32
    %2 = arith.cmpi ne, %1, %c0_i32_0 : i32
    scf.if %2 {
      %cst_19 = arith.constant 0.000000e+00 : f32
      %19 = vector.broadcast %cst_19 : f32 to vector<1x2x128xf32>
      %c0_20 = arith.constant 0 : index
      %c0_21 = arith.constant 0 : index
      %c0_22 = arith.constant 0 : index
      %20 = vector.load %arg5[%c0_20, %c0_21, %c0_22] : memref<1x2x128xf32, #tpu.memory_space<vmem>>, vector<1x2x128xf32>
      tpu.vector_store %arg5[%c0_20, %c0_21, %c0_22], %19 {strides = array<i32>} : memref<1x2x128xf32, #tpu.memory_space<vmem>>, vector<1x2x128xf32>,
      %cst_23 = arith.constant 0.000000e+00 : f32
      %21 = vector.broadcast %cst_23 : f32 to vector<1x2x128xf32>
      %c0_24 = arith.constant 0 : index
      %c0_25 = arith.constant 0 : index
      %c0_26 = arith.constant 0 : index
      %22 = vector.load %arg6[%c0_24, %c0_25, %c0_26] : memref<1x2x128xf32, #tpu.memory_space<vmem>>, vector<1x2x128xf32>
      tpu.vector_store %arg6[%c0_24, %c0_25, %c0_26], %21 {strides = array<i32>} : memref<1x2x128xf32, #tpu.memory_space<vmem>>, vector<1x2x128xf32>,
    } else {
    }
    %c0 = arith.constant 0 : index
    %c0_1 = arith.constant 0 : index
    %c0_2 = arith.constant 0 : index
    %3 = vector.load %arg3[%c0, %c0_1, %c0_2] : memref<2x8x128xf32, #tpu.memory_space<vmem>>, vector<2x8x128xf32>
    %c0_3 = arith.constant 0 : index
    %c0_4 = arith.constant 0 : index
    %c0_5 = arith.constant 0 : index
    %4 = vector.load %arg4[%c0_3, %c0_4, %c0_5] : memref<2x8x128xf32, #tpu.memory_space<vmem>>, vector<2x8x128xf32>
    %c0_6 = arith.constant 0 : index
    %c0_7 = arith.constant 0 : index
    %c0_8 = arith.constant 0 : index
    %5 = vector.load %arg5[%c0_6, %c0_7, %c0_8] : memref<1x2x128xf32, #tpu.memory_space<vmem>>, vector<1x2x128xf32>
    %6 = arith.mulf %3, %4 : vector<2x8x128xf32>
    %cst = arith.constant dense<0.000000e+00> : vector<2x128xf32>
    %7 = vector.multi_reduction <add>, %6, %cst [1] : vector<2x8x128xf32> to vector<2x128xf32>
    %8 = vector.shape_cast %7 : vector<2x128xf32> to vector<1x2x128xf32>
    %9 = arith.addf %5, %8 : vector<1x2x128xf32>
    %c0_9 = arith.constant 0 : index
    %c0_10 = arith.constant 0 : index
    %c0_11 = arith.constant 0 : index
    %10 = vector.load %arg5[%c0_9, %c0_10, %c0_11] : memref<1x2x128xf32, #tpu.memory_space<vmem>>, vector<1x2x128xf32>
    tpu.vector_store %arg5[%c0_9, %c0_10, %c0_11], %9 {strides = array<i32>} : memref<1x2x128xf32, #tpu.memory_space<vmem>>, vector<1x2x128xf32>,
    %c0_12 = arith.constant 0 : index
    %c0_13 = arith.constant 0 : index
    %c0_14 = arith.constant 0 : index
    %11 = vector.load %arg6[%c0_12, %c0_13, %c0_14] : memref<1x2x128xf32, #tpu.memory_space<vmem>>, vector<1x2x128xf32>
    %12 = arith.mulf %3, %3 : vector<2x8x128xf32>
    %13 = arith.mulf %4, %4 : vector<2x8x128xf32>
    %14 = arith.addf %12, %13 : vector<2x8x128xf32>
    %cst_15 = arith.constant dense<0.000000e+00> : vector<2x128xf32>
    %15 = vector.multi_reduction <add>, %14, %cst_15 [1] : vector<2x8x128xf32> to vector<2x128xf32>
    %16 = vector.shape_cast %15 : vector<2x128xf32> to vector<1x2x128xf32>
    %17 = arith.addf %11, %16 : vector<1x2x128xf32>
    %c0_16 = arith.constant 0 : index
    %c0_17 = arith.constant 0 : index
    %c0_18 = arith.constant 0 : index
    %18 = vector.load %arg6[%c0_16, %c0_17, %c0_18] : memref<1x2x128xf32, #tpu.memory_space<vmem>>, vector<1x2x128xf32>
    tpu.vector_store %arg6[%c0_16, %c0_17, %c0_18], %17 {strides = array<i32>} : memref<1x2x128xf32, #tpu.memory_space<vmem>>, vector<1x2x128xf32>,
    return
  }
  func.func @transform_0(%arg0: i32, %arg1: i32, %arg2: i32) -> (i32, i32, i32) {
    %c1_i32 = arith.constant 1 : i32
    %0 = arith.muli %arg0, %c1_i32 : i32
    %1 = arith.addi %0, %arg2 : i32
    %c0_i32 = arith.constant 0 : i32
    %c0_i32_0 = arith.constant 0 : i32
    return %arg1, %1, %c0_i32 : i32, i32, i32
  }
  func.func @transform_1(%arg0: i32, %arg1: i32, %arg2: i32) -> (i32, i32, i32) {
    %c1_i32 = arith.constant 1 : i32
    %0 = arith.muli %arg0, %c1_i32 : i32
    %1 = arith.addi %0, %arg2 : i32
    %c0_i32 = arith.constant 0 : i32
    %c0_i32_0 = arith.constant 0 : i32
    return %arg1, %1, %c0_i32 : i32, i32, i32
  }
  func.func @transform_2(%arg0: i32, %arg1: i32, %arg2: i32) -> (i32, i32, i32) {
    %c0_i32 = arith.constant 0 : i32
    %c0_i32_0 = arith.constant 0 : i32
    return %arg0, %arg1, %c0_i32 : i32, i32, i32
  }
  func.func @transform_3(%arg0: i32, %arg1: i32, %arg2: i32) -> (i32, i32, i32) {
    %c0_i32 = arith.constant 0 : i32
    %c0_i32_0 = arith.constant 0 : i32
    return %arg0, %arg1, %c0_i32 : i32, i32, i32
  }
}

</mosaic_0001>

<llo_original>
// kernel: tpu_custom_call.1
$region0: #{tpu_custom_call.1}
  #allocation0 [shape = 'u32[]', space=smem, size = 0x4, offset = 0x4, fixed_abs, tag = 'smem constant byte address 0x4 - core index']
  #allocation1 [shape = 'u32[72,128]{1,0:T(1,128)}', space=vmem, size = 0x9000, scoped, tag = 'internal scratch']
  %s0 = inlined_call_operand.hbm [shape: f32[2,8,128], index: 0, kind: input, shape index: {}]
  %s1 = inlined_call_operand.hbm [shape: f32[2,8,128], index: 1, kind: input, shape index: {}]
  %s2 = inlined_call_operand.hbm [shape: f32[1,2,128], index: 2, kind: output, shape index: {0}]
  %s3 = inlined_call_operand.hbm [shape: f32[1,2,128], index: 3, kind: output, shape index: {1}]
  %4 = xla_tuple %s2, %s3
  %s5 = sld [smem:[#allocation0]]
  $region38: #{tpu_custom_call.1} parent=0
    _
  %s7 = ssub.s32 1, %s5
  %s8 = scalar_select 0, %s7, %s5
  $region1: #{tpu_custom_call.1} parent=0
    #allocation2 [shape = 'u8[8192]{0}', space=vmem, size = 0x2000, scoped, tag = 'input window, operand 0, single buffered']
    #allocation3 [shape = 's32[1]{0}', space=sflag, size = 0x4, scoped, tag = 'scoped memory for tpu_custom_call.1']
    #allocation4 [shape = 's32[1]{0}', space=sflag, size = 0x4, scoped, tag = 'scoped memory for tpu_custom_call.1']
    #allocation5 [shape = 'u8[8192]{0}', space=vmem, size = 0x2000, scoped, tag = 'input window, operand 1, single buffered']
    #allocation6 [shape = 's32[1]{0}', space=sflag, size = 0x4, scoped, tag = 'scoped memory for tpu_custom_call.1']
    #allocation7 [shape = 'u8[1024]{0}', space=vmem, size = 0x400, scoped, tag = 'output window, operand 0, single buffered']
    #allocation8 [shape = 'u8[1024]{0}', space=vmem, size = 0x400, scoped, tag = 'output window, operand 1, single buffered']
    #allocation9 [shape = 's32[1]{0}', space=sflag, size = 0x4, scoped, tag = 'scoped memory for tpu_custom_call.1']
    %9 = vsyncpa [#allocation3], 0
    %10 = vsyncpa [#allocation6], 0
    %11 = vsyncpa [#allocation4], 0
    %12 = vsyncpa [#allocation9], 0
    // Predicated region
    $region2: #{tpu_custom_call.1} parent=1 // pred_check
      _
    $region3: #{tpu_custom_call.1} parent=1 // pred_check_branch
      %14 = sbr.rel (0) target = $region5
    $region4: #{tpu_custom_call.1} parent=1 // pred_region
      %s15 = sadd.s32 0, 0
      %17 = vsyncadd [#allocation3], 0
      %s18 = smul.addr %s15, 8
      %s19 = scalar_lea.hbm %s0, %s18
      %s20 = sshll.u32 %s19, 4
      %s21 = int_to_ptr.hbm [resolvable:$true] %s20
      %s22 = sshll.u32 [#allocation2], 4
      %s23 = int_to_ptr.vmem [resolvable:$true] %s22
      %28 = dma.hbm_to_vmem [thread:$0]  %s21, 256, %s23, [#allocation3], 128, 128, 8
    $region5: #{tpu_custom_call.1} parent=1 // pred_fallthru
      _
    // Predicated region
    $region6: #{tpu_custom_call.1} parent=1 // pred_check
      _
    $region7: #{tpu_custom_call.1} parent=1 // pred_check_branch
      %30 = sbr.rel (0) target = $region9
    $region8: #{tpu_custom_call.1} parent=1 // pred_region
      %s31 = sadd.s32 0, 0
      %33 = vsyncadd [#allocation6], 0
      %s34 = smul.addr %s31, 8
      %s35 = scalar_lea.hbm %s1, %s34
      %s36 = sshll.u32 %s35, 4
      %s37 = int_to_ptr.hbm [resolvable:$true] %s36
      %s38 = sshll.u32 [#allocation5], 4
      %s39 = int_to_ptr.vmem [resolvable:$true] %s38
      %44 = dma.hbm_to_vmem [thread:$0]  %s37, 256, %s39, [#allocation6], 128, 128, 8
    $region9: #{tpu_custom_call.1} parent=1 // pred_fallthru
      _
    // Predicated region
    $region10: #{tpu_custom_call.1} parent=1 // pred_check
      _
    $region11: #{tpu_custom_call.1} parent=1 // pred_check_branch
      %46 = sbr.rel (0) target = $region13
    $region12: #{tpu_custom_call.1} parent=1 // pred_region
      %48 = dma.done [#allocation3], 256
    $region13: #{tpu_custom_call.1} parent=1 // pred_fallthru
      _
    // Predicated region
    $region14: #{tpu_custom_call.1} parent=1 // pred_check
      _
    $region15: #{tpu_custom_call.1} parent=1 // pred_check_branch
      %50 = sbr.rel (0) target = $region17
    $region16: #{tpu_custom_call.1} parent=1 // pred_region
      %52 = dma.done [#allocation6], 256
    $region17: #{tpu_custom_call.1} parent=1 // pred_fallthru
      _
    %s53 = sadd.s32 0, 0
    %s54 = sadd.s32 0, 0
    %p55 = scmp.eq.s32.totalorder 0, 0
    // Predicated region
    $region18: #{tpu_custom_call.1} parent=1 // pred_check
      %p56 = pneg %p55
    $region19: #{tpu_custom_call.1} parent=1 // pred_check_branch
      %58 = sbr.rel (%p56) target = $region21
    $region20: #{tpu_custom_call.1} parent=1 // pred_region
      %59 = vst [vmem:[#allocation7] sm:$0x3] 0.0
      %60 = vst [vmem:[#allocation8] sm:$0x3] 0.0
    $region21: #{tpu_custom_call.1} parent=1 // pred_fallthru
      _
    %v61 = vld [vmem:[#allocation2] sm:$0xff]
    %v62 = vld [vmem:[#allocation2 + $0x8] sm:$0xff]
    %v63 = vld [vmem:[#allocation5] sm:$0xff]
    %v64 = vld [vmem:[#allocation5 + $0x8] sm:$0xff]
    %v65 = vld [vmem:[#allocation7] sm:$0x3]
    %v66 = vmul.f32 %v61, %v63
    %v67 = vmul.f32 %v62, %v64
    %v68 = vrot.slane %v66, 4
    %v69 = vadd.f32 %v66, %v68
    %v70 = vrot.slane %v69, 2
    %v71 = vadd.f32 %v69, %v70
    %v72 = vrot.slane %v71, 1
    %v73 = vadd.f32 %v71, %v72
    %v74 = vrot.slane %v67, 4
    %v75 = vadd.f32 %v67, %v74
    %v76 = vrot.slane %v75, 2
    %v77 = vadd.f32 %v75, %v76
    %v78 = vrot.slane %v77, 1
    %v79 = vadd.f32 %v77, %v78
    %vm82 = vcmask 1041409
    %v83 = vsel %vm82, %v79, %v73
    %v85 = vadd.f32 %v65, %v83
    %86 = vst [vmem:[#allocation7] sm:$0x3] %v85
    %v87 = vld [vmem:[#allocation8] sm:$0x3]
    %v88 = vmul.f32 %v61, %v61
    %v89 = vmul.f32 %v62, %v62
    %v90 = vmul.f32 %v63, %v63
    %v91 = vmul.f32 %v64, %v64
    %v92 = vadd.f32 %v88, %v90
    %v93 = vadd.f32 %v89, %v91
    %v94 = vrot.slane %v92, 4
    %v95 = vadd.f32 %v92, %v94
    %v96 = vrot.slane %v95, 2
    %v97 = vadd.f32 %v95, %v96
    %v98 = vrot.slane %v97, 1
    %v99 = vadd.f32 %v97, %v98
    %v100 = vrot.slane %v93, 4
    %v101 = vadd.f32 %v93, %v100
    %v102 = vrot.slane %v101, 2
    %v103 = vadd.f32 %v101, %v102
    %v104 = vrot.slane %v103, 1
    %v105 = vadd.f32 %v103, %v104
    %v108 = vsel %vm82, %v105, %v99
    %v110 = vadd.f32 %v87, %v108
    %111 = vst [vmem:[#allocation8] sm:$0x3] %v110
    // Predicated region
    $region22: #{tpu_custom_call.1} parent=1 // pred_check
      _
    $region23: #{tpu_custom_call.1} parent=1 // pred_check_branch
      %113 = sbr.rel (0) target = $region25
    $region24: #{tpu_custom_call.1} parent=1 // pred_region
      %115 = vsyncadd [#allocation4], 0
      %s117 = sshll.u32 [#allocation7], 4
      %s118 = int_to_ptr.vmem [resolvable:$true] %s117
      %s119 = sshll.u32 %s2, 4
      %s120 = int_to_ptr.hbm [resolvable:$true] %s119
      %122 = dma.vmem_to_hbm [thread:$0]  %s118, 32, %s120, [#allocation4]
    $region25: #{tpu_custom_call.1} parent=1 // pred_fallthru
      _
    // Predicated region
    $region26: #{tpu_custom_call.1} parent=1 // pred_check
      _
    $region27: #{tpu_custom_call.1} parent=1 // pred_check_branch
      %124 = sbr.rel (0) target = $region29
    $region28: #{tpu_custom_call.1} parent=1 // pred_region
      %126 = vsyncadd [#allocation9], 0
      %s128 = sshll.u32 [#allocation8], 4
      %s129 = int_to_ptr.vmem [resolvable:$true] %s128
      %s130 = sshll.u32 %s3, 4
      %s131 = int_to_ptr.hbm [resolvable:$true] %s130
      %133 = dma.vmem_to_hbm [thread:$0]  %s129, 32, %s131, [#allocation9]
    $region29: #{tpu_custom_call.1} parent=1 // pred_fallthru
      _
    // Predicated region
    $region30: #{tpu_custom_call.1} parent=1 // pred_check
      _
    $region31: #{tpu_custom_call.1} parent=1 // pred_check_branch
      %135 = sbr.rel (0) target = $region33
    $region32: #{tpu_custom_call.1} parent=1 // pred_region
      %137 = dma.done [#allocation4], 32
    $region33: #{tpu_custom_call.1} parent=1 // pred_fallthru
      _
    // Predicated region
    $region34: #{tpu_custom_call.1} parent=1 // pred_check
      _
    $region35: #{tpu_custom_call.1} parent=1 // pred_check_branch
      %139 = sbr.rel (0) target = $region37
    $region36: #{tpu_custom_call.1} parent=1 // pred_region
      %141 = dma.done [#allocation9], 32
    $region37: #{tpu_custom_call.1} parent=1 // pred_fallthru
      _
    %142 = vsyncpa [#allocation3], 1
    %143 = vsyncpa [#allocation6], 1
    %144 = vsyncpa [#allocation4], 1
    %145 = vsyncpa [#allocation9], 1

</llo_original>
